<compile_context>
chip_gen: v5e
topology: v5e:2x2
jax: 0.10.0
libtpu: 0.0.40
codegen_flags: <defaults>
</compile_context>

<pallas_src>
import math
from functools import partial

import jax
import jax.numpy as jnp
from jax import lax
from jax.experimental import pallas as pl
from jax.experimental.pallas import tpu as pltpu

# Per-grid-step VMEM working-set target: 2x double-buffered input +
# 2x double-buffered output + ~4 f32 temporaries inside the kernel body.
_WS_BUDGET_BYTES = 16 * 1024 * 1024
# Explicit scoped-VMEM limit: above v5e's 16 MiB default, well under v7x's
# 64 MiB physical VMEM.
_VMEM_LIMIT_BYTES = 32 * 1024 * 1024


def _round_down(x, m):
    return (x // m) * m


def _round_up(x, m):
    return ((x + m - 1) // m) * m


def _max_tile_elems(itemsize):
    # Bytes per (padded) tile element across the whole per-step working set.
    per_elem = 2 * itemsize + 2 * itemsize + 4 * 4
    return max(_WS_BUDGET_BYTES // per_elem, 8 * 128)


def _pick_tm(n_rows, lane_width, itemsize):
    lanes_padded = _round_up(lane_width, 128)
    tm = _round_down(_max_tile_elems(itemsize) // lanes_padded, 8)
    # Aim for >= ~8 grid steps when there is enough work (better pipelining,
    # and both v7x TensorCores get a share), but never fragment small
    # problems below 512 rows per step.
    tm = min(tm, max(512, _round_up(pl.cdiv(n_rows, 8), 8)))
    tm = min(tm, _round_up(n_rows, 8))
    return max(tm, 8)


# ----------------------------------------------------------------------------
# channels_last, dense path: C is a multiple of 128 (or rare fallback).
# Normalize the last (lane) axis of a (N, C) slab.
# ----------------------------------------------------------------------------
def _ln_rows_kernel(x_ref, w_ref, b_ref, o_ref, *, eps):
    # x_ref: (TM, C); w_ref/b_ref: (1, C) broadcast over rows.
    x = x_ref[...].astype(jnp.float32)
    mean = jnp.mean(x, axis=-1, keepdims=True)
    xc = x - mean
    var = jnp.mean(xc * xc, axis=-1, keepdims=True)          # biased variance
    rstd = lax.rsqrt(var + eps)
    scale = rstd * w_ref[...].astype(jnp.float32)             # fold affine scale
    o_ref[...] = (xc * scale + b_ref[...].astype(jnp.float32)).astype(o_ref.dtype)


def _layer_norm_rows_dense(x2d, weight, bias, eps):
    N, C = x2d.shape
    tm = _pick_tm(N, C, x2d.dtype.itemsize)
    return pl.pallas_call(
        partial(_ln_rows_kernel, eps=eps),
        out_shape=jax.ShapeDtypeStruct((N, C), x2d.dtype),
        grid_spec=pltpu.PrefetchScalarGridSpec(
            num_scalar_prefetch=0,
            grid=(pl.cdiv(N, tm),),
            in_specs=[
                pl.BlockSpec((tm, C), lambda i: (i, 0)),
                pl.BlockSpec((1, C), lambda i: (0, 0)),
                pl.BlockSpec((1, C), lambda i: (0, 0)),
            ],
            out_specs=pl.BlockSpec((tm, C), lambda i: (i, 0)),
        ),
        compiler_params=pltpu.CompilerParams(
            dimension_semantics=("parallel",),
            vmem_limit_bytes=_VMEM_LIMIT_BYTES,
        ),
    )(x2d, weight.reshape(1, C), bias.reshape(1, C))


# ----------------------------------------------------------------------------
# channels_last, grouped lane-dense path: C not a multiple of 128.
# Pack G rows per lane-dense block of width L = G*C; per-group reduce /
# broadcast via tiny 0/1 segment matmuls on the idle MXU.
# ----------------------------------------------------------------------------
_REDUCE_DIMS = (((1,), (1,)), ((), ()))   # (TM, L) x (Gp, L) -> (TM, Gp)
_BCAST_DIMS = (((1,), (0,)), ((), ()))    # (TM, Gp) x (Gp, L) -> (TM, L)


def _seg_matmul(a, segt, dims):
    # bf16 hi/lo split: the 0/1 segment matrix is bf16-exact and the hi part
    # of `a` is bf16-exact, so each pass is exact and the sum is f32-accurate
    # no matter how many bf16 passes the MXU lowering uses for f32 operands.
    hi = a.astype(jnp.bfloat16).astype(jnp.float32)
    lo = a - hi
    return (lax.dot_general(hi, segt, dims, preferred_element_type=jnp.float32)
            + lax.dot_general(lo, segt, dims, preferred_element_type=jnp.float32))


def _ln_rows_grouped_kernel(x_ref, w_ref, b_ref, segt_ref, o_ref, *, eps, inv_c):
    # x_ref: (TM, L) lane-dense; segt_ref: (Gp, L) 0/1 segment matrix.
    x = x_ref[...].astype(jnp.float32)
    segt = segt_ref[...]
    mean = _seg_matmul(x, segt, _REDUCE_DIMS) * inv_c          # (TM, Gp)
    xc = x - _seg_matmul(mean, segt, _BCAST_DIMS)              # (TM, L)
    var = _seg_matmul(xc * xc, segt, _REDUCE_DIMS) * inv_c     # biased variance
    rstd = lax.rsqrt(var + eps)                                # (TM, Gp)
    scale = _seg_matmul(rstd, segt, _BCAST_DIMS) * w_ref[...]  # rstd*w per lane
    o_ref[...] = (xc * scale + b_ref[...]).astype(o_ref.dtype)


def _layer_norm_rows_grouped(x2d, weight, bias, eps, G):
    N, C = x2d.shape
    L = G * C
    Gp = _round_up(G, 8)                     # pad group axis to a full sublane
    n_rows = N // G
    xg = x2d.reshape(n_rows, L)              # free: row-major contiguous

    # segt[g, j] = 1 iff lane j belongs to group g (rows g >= G stay zero).
    grp = jnp.arange(L, dtype=jnp.int32) // C
    segt = (grp[None, :] == jnp.arange(Gp, dtype=jnp.int32)[:, None]).astype(jnp.float32)
    w_t = jnp.tile(weight.astype(jnp.float32), G).reshape(1, L)
    b_t = jnp.tile(bias.astype(jnp.float32), G).reshape(1, L)

    tm = _pick_tm(n_rows, L, x2d.dtype.itemsize)
    yg = pl.pallas_call(
        partial(_ln_rows_grouped_kernel, eps=eps, inv_c=1.0 / C),
        out_shape=jax.ShapeDtypeStruct((n_rows, L), x2d.dtype),
        grid_spec=pltpu.PrefetchScalarGridSpec(
            num_scalar_prefetch=0,
            grid=(pl.cdiv(n_rows, tm),),
            in_specs=[
                pl.BlockSpec((tm, L), lambda i: (i, 0)),
                pl.BlockSpec((1, L), lambda i: (0, 0)),
                pl.BlockSpec((1, L), lambda i: (0, 0)),
                pl.BlockSpec((Gp, L), lambda i: (0, 0)),
            ],
            out_specs=pl.BlockSpec((tm, L), lambda i: (i, 0)),
        ),
        compiler_params=pltpu.CompilerParams(
            dimension_semantics=("parallel",),
            vmem_limit_bytes=_VMEM_LIMIT_BYTES,
        ),
    )(xg, w_t, b_t, segt)
    return yg.reshape(N, C)


# ----------------------------------------------------------------------------
# channels_first: normalize the channel (sublane) axis of a (B, C, S) slab.
# ----------------------------------------------------------------------------
def _ln_cfirst_kernel(x_ref, w_ref, b_ref, o_ref, *, eps):
    # x_ref: (Bb, C, TS); w_ref/b_ref: (1, C, 1).
    x = x_ref[...].astype(jnp.float32)
    mean = jnp.mean(x, axis=1, keepdims=True)
    xc = x - mean
    var = jnp.mean(xc * xc, axis=1, keepdims=True)            # biased variance
    rstd = lax.rsqrt(var + eps)
    scale = rstd * w_ref[...].astype(jnp.float32)
    o_ref[...] = (xc * scale + b_ref[...].astype(jnp.float32)).astype(o_ref.dtype)


def _largest_divisor_leq(n, cap):
    cap = max(1, min(cap, n))
    for d in range(cap, 0, -1):
        if n % d == 0:
            return d
    return 1


def _pick_cfirst_tile(B, C, S, itemsize):
    max_elems = _max_tile_elems(itemsize)
    c_pad = _round_up(C, 8)                          # sublane padding
    ts = _round_down(max(max_elems // c_pad, 128), 128)
    if ts >= S:
        ts = S
        bb = max(1, max_elems // (c_pad * _round_up(S, 128)))
        bb = _largest_divisor_leq(B, bb)             # no partial leading blocks
    else:
        bb = 1
    return bb, ts


def _layer_norm_cfirst(x3d, weight, bias, eps):
    B, C, S = x3d.shape
    bb, ts = _pick_cfirst_tile(B, C, S, x3d.dtype.itemsize)
    return pl.pallas_call(
        partial(_ln_cfirst_kernel, eps=eps),
        out_shape=jax.ShapeDtypeStruct((B, C, S), x3d.dtype),
        grid_spec=pltpu.PrefetchScalarGridSpec(
            num_scalar_prefetch=0,
            grid=(B // bb, pl.cdiv(S, ts)),
            in_specs=[
                pl.BlockSpec((bb, C, ts), lambda b, s: (b, 0, s)),
                pl.BlockSpec((1, C, 1), lambda b, s: (0, 0, 0)),
                pl.BlockSpec((1, C, 1), lambda b, s: (0, 0, 0)),
            ],
            out_specs=pl.BlockSpec((bb, C, ts), lambda b, s: (b, 0, s)),
        ),
        compiler_params=pltpu.CompilerParams(
            dimension_semantics=("parallel", "parallel"),
            vmem_limit_bytes=_VMEM_LIMIT_BYTES,
        ),
    )(x3d, weight.reshape(1, C, 1), bias.reshape(1, C, 1))


# ----------------------------------------------------------------------------
# Forward dispatch + module wrapper (mirrors the PyTorch LayerNorm forward).
# ----------------------------------------------------------------------------
def _layer_norm_forward(x, weight, bias, *, eps, data_format):
    C = weight.shape[0]
    if data_format == "channels_last":
        assert x.shape[-1] == C
        N = math.prod(x.shape[:-1])
        x2d = x.reshape(N, C)
        if C % 128 == 0:
            y2d = _layer_norm_rows_dense(x2d, weight, bias, eps)
        else:
            G = 128 // math.gcd(C, 128)
            if N % G == 0:
                y2d = _layer_norm_rows_grouped(x2d, weight, bias, eps, G)
            else:
                # Rare fallback: sub-128-lane blocks (correct, just slower).
                y2d = _layer_norm_rows_dense(x2d, weight, bias, eps)
        return y2d.reshape(x.shape)
    else:  # channels_first
        B, Cc, H, W = x.shape
        assert Cc == C
        y = _layer_norm_cfirst(x.reshape(B, C, H * W), weight, bias, eps)
        return y.reshape(B, C, H, W)


class LayerNormPallas:
    """Pallas-TPU equivalent of the PyTorch LayerNorm module."""

    def __init__(self, normalized_shape, eps=1e-6, data_format="channels_last"):
        if data_format not in ("channels_last", "channels_first"):
            raise NotImplementedError
        # Matches nn.Parameter(torch.ones/zeros(...)) init.
        self.weight = jnp.ones((normalized_shape,), jnp.float32)
        self.bias = jnp.zeros((normalized_shape,), jnp.float32)
        self.eps = float(eps)
        self.data_format = data_format
        self.normalized_shape = (normalized_shape,)
        # jit the wrapper so the layout-plumbing reshapes stay free bitcasts.
        self._fwd = jax.jit(partial(_layer_norm_forward, eps=self.eps,
                                    data_format=self.data_format))

    def __call__(self, x):
        return self._fwd(x, self.weight, self.bias)


def _reference(x, weight, bias, eps, data_format):
    if data_format == "channels_last":
        u = jnp.mean(x, axis=-1, keepdims=True)
        s = jnp.mean((x - u) ** 2, axis=-1, keepdims=True)
        return (x - u) / jnp.sqrt(s + eps) * weight + bias
    u = jnp.mean(x, axis=1, keepdims=True)
    s = jnp.mean((x - u) ** 2, axis=1, keepdims=True)
    xn = (x - u) / jnp.sqrt(s + eps)
    return weight[:, None, None] * xn + bias[:, None, None]


if __name__ == "__main__":
    key = jax.random.PRNGKey(0)
    keys = jax.random.split(key, 9)

    # channels_first: NCHW, normalize over C in native layout.
    x_cf = jax.random.normal(keys[0], (2, 4, 16, 16), jnp.float32)
    ln_cf = LayerNormPallas(4, eps=1e-6, data_format="channels_first")
    ln_cf.weight = 1.0 + 0.1 * jax.random.normal(keys[1], (4,), jnp.float32)
    ln_cf.bias = 0.1 * jax.random.normal(keys[2], (4,), jnp.float32)
    y_cf = jax.block_until_ready(ln_cf(x_cf))
    ref_cf = _reference(x_cf, ln_cf.weight, ln_cf.bias, ln_cf.eps, "channels_first")
    assert y_cf.shape == x_cf.shape
    assert jnp.allclose(y_cf, ref_cf, atol=1e-4, rtol=1e-4), \
        float(jnp.max(jnp.abs(y_cf - ref_cf)))

    # channels_last, C=32 (not a multiple of 128): grouped lane-dense path.
    x_cl = jax.random.normal(keys[3], (2, 16, 16, 32), jnp.float32)
    ln_cl = LayerNormPallas(32, eps=1e-6, data_format="channels_last")
    ln_cl.weight = 1.0 + 0.1 * jax.random.normal(keys[4], (32,), jnp.float32)
    ln_cl.bias = 0.1 * jax.random.normal(keys[5], (32,), jnp.float32)
    y_cl = jax.block_until_ready(ln_cl(x_cl))
    ref_cl = _reference(x_cl, ln_cl.weight, ln_cl.bias, ln_cl.eps, "channels_last")
    assert y_cl.shape == x_cl.shape
    assert jnp.allclose(y_cl, ref_cl, atol=1e-4, rtol=1e-4), \
        float(jnp.max(jnp.abs(y_cl - ref_cl)))

    # channels_last, C=128 (multiple of 128): plain lane-dense row path.
    x_cd = jax.random.normal(keys[6], (2, 8, 8, 128), jnp.float32)
    ln_cd = LayerNormPallas(128, eps=1e-6, data_format="channels_last")
    ln_cd.weight = 1.0 + 0.1 * jax.random.normal(keys[7], (128,), jnp.float32)
    ln_cd.bias = 0.1 * jax.random.normal(keys[8], (128,), jnp.float32)
    y_cd = jax.block_until_ready(ln_cd(x_cd))
    ref_cd = _reference(x_cd, ln_cd.weight, ln_cd.bias, ln_cd.eps, "channels_last")
    assert y_cd.shape == x_cd.shape
    assert jnp.allclose(y_cd, ref_cd, atol=1e-4, rtol=1e-4), \
        float(jnp.max(jnp.abs(y_cd - ref_cd)))

    print("KERNEL_OK")
</pallas_src>

<mosaic_0001>
module attributes {stable_mosaic.version = 11 : i64} {
  func.func @_ln_cfirst_kernel(%arg0: i32, %arg1: i32, %arg2: memref<2x4x256xf32, #tpu.memory_space<vmem>>, %arg3: memref<1x4x1xf32, #tpu.memory_space<vmem>>, %arg4: memref<1x4x1xf32, #tpu.memory_space<vmem>>, %arg5: memref<2x4x256xf32, #tpu.memory_space<vmem>>) attributes {dimension_semantics = [#tpu.dimension_semantics<parallel>, #tpu.dimension_semantics<parallel>], iteration_bounds = array<i64: 1, 1>, scalar_prefetch = 0 : i64, scratch_operands = 0 : i64, tpu.core_type = #tpu.core_type<tc>, window_params = [{transform_indices = @transform_0, window_bounds = array<i64: 2, 4, 256>}, {pipeline_mode = #tpu.pipeline_mode<synchronous>, transform_indices = @transform_1, window_bounds = array<i64: 1, 4, 1>}, {pipeline_mode = #tpu.pipeline_mode<synchronous>, transform_indices = @transform_2, window_bounds = array<i64: 1, 4, 1>}, {transform_indices = @transform_3, window_bounds = array<i64: 2, 4, 256>}]} {
    %c0 = arith.constant 0 : index
    %c0_0 = arith.constant 0 : index
    %c0_1 = arith.constant 0 : index
    %0 = vector.load %arg2[%c0, %c0_0, %c0_1] : memref<2x4x256xf32, #tpu.memory_space<vmem>>, vector<2x4x256xf32>
    %cst = arith.constant dense<0.000000e+00> : vector<2x256xf32>
    %1 = vector.multi_reduction <add>, %0, %cst [1] : vector<2x4x256xf32> to vector<2x256xf32>
    %2 = vector.shape_cast %1 : vector<2x256xf32> to vector<2x1x256xf32>
    %cst_2 = arith.constant 4.000000e+00 : f32
    %3 = vector.broadcast %cst_2 : f32 to vector<2x1x256xf32>
    %4 = arith.divf %2, %3 : vector<2x1x256xf32>
    %5 = vector.broadcast %4 : vector<2x1x256xf32> to vector<2x4x256xf32>
    %6 = arith.subf %0, %5 : vector<2x4x256xf32>
    %7 = arith.mulf %6, %6 : vector<2x4x256xf32>
    %cst_3 = arith.constant dense<0.000000e+00> : vector<2x256xf32>
    %8 = vector.multi_reduction <add>, %7, %cst_3 [1] : vector<2x4x256xf32> to vector<2x256xf32>
    %9 = vector.shape_cast %8 : vector<2x256xf32> to vector<2x1x256xf32>
    %cst_4 = arith.constant 4.000000e+00 : f32
    %10 = vector.broadcast %cst_4 : f32 to vector<2x1x256xf32>
    %11 = arith.divf %9, %10 : vector<2x1x256xf32>
    %cst_5 = arith.constant 9.99999997E-7 : f32
    %12 = vector.broadcast %cst_5 : f32 to vector<2x1x256xf32>
    %13 = arith.addf %11, %12 : vector<2x1x256xf32>
    %14 = math.rsqrt %13 : vector<2x1x256xf32>
    %c0_6 = arith.constant 0 : index
    %c0_7 = arith.constant 0 : index
    %c0_8 = arith.constant 0 : index
    %15 = vector.load %arg3[%c0_6, %c0_7, %c0_8] : memref<1x4x1xf32, #tpu.memory_space<vmem>>, vector<1x4x1xf32>
    %16 = vector.broadcast %14 : vector<2x1x256xf32> to vector<2x4x256xf32>
    %17 = vector.broadcast %15 : vector<1x4x1xf32> to vector<2x4x256xf32>
    %18 = arith.mulf %16, %17 : vector<2x4x256xf32>
    %19 = arith.mulf %6, %18 : vector<2x4x256xf32>
    %c0_9 = arith.constant 0 : index
    %c0_10 = arith.constant 0 : index
    %c0_11 = arith.constant 0 : index
    %20 = vector.load %arg4[%c0_9, %c0_10, %c0_11] : memref<1x4x1xf32, #tpu.memory_space<vmem>>, vector<1x4x1xf32>
    %21 = vector.broadcast %20 : vector<1x4x1xf32> to vector<2x4x256xf32>
    %22 = arith.addf %19, %21 : vector<2x4x256xf32>
    %c0_12 = arith.constant 0 : index
    %c0_13 = arith.constant 0 : index
    %c0_14 = arith.constant 0 : index
    %23 = vector.load %arg5[%c0_12, %c0_13, %c0_14] : memref<2x4x256xf32, #tpu.memory_space<vmem>>, vector<2x4x256xf32>
    tpu.vector_store %arg5[%c0_12, %c0_13, %c0_14], %22 {strides = array<i32>} : memref<2x4x256xf32, #tpu.memory_space<vmem>>, vector<2x4x256xf32>,
    return
  }
  func.func @transform_0(%arg0: i32, %arg1: i32) -> (i32, i32, i32) {
    %c0_i32 = arith.constant 0 : i32
    %c0_i32_0 = arith.constant 0 : i32
    return %arg0, %c0_i32, %arg1 : i32, i32, i32
  }
  func.func @transform_1(%arg0: i32, %arg1: i32) -> (i32, i32, i32) {
    %c0_i32 = arith.constant 0 : i32
    %c0_i32_0 = arith.constant 0 : i32
    %c0_i32_1 = arith.constant 0 : i32
    %c0_i32_2 = arith.constant 0 : i32
    return %c0_i32, %c0_i32_0, %c0_i32_1 : i32, i32, i32
  }
  func.func @transform_2(%arg0: i32, %arg1: i32) -> (i32, i32, i32) {
    %c0_i32 = arith.constant 0 : i32
    %c0_i32_0 = arith.constant 0 : i32
    %c0_i32_1 = arith.constant 0 : i32
    %c0_i32_2 = arith.constant 0 : i32
    return %c0_i32, %c0_i32_0, %c0_i32_1 : i32, i32, i32
  }
  func.func @transform_3(%arg0: i32, %arg1: i32) -> (i32, i32, i32) {
    %c0_i32 = arith.constant 0 : i32
    %c0_i32_0 = arith.constant 0 : i32
    return %arg0, %c0_i32, %arg1 : i32, i32, i32
  }
}

</mosaic_0001>

<llo_original>
// kernel: _layer_norm_forward.1
$region0: #{_layer_norm_forward.1}
  #allocation0 [shape = 'u32[]', space=smem, size = 0x4, offset = 0x4, fixed_abs, tag = 'smem constant byte address 0x4 - core index']
  #allocation1 [shape = 'u32[72,128]{1,0:T(1,128)}', space=vmem, size = 0x9000, scoped, tag = 'internal scratch']
  %s0 = inlined_call_operand.vmem [shape: f32[2,4,256], index: 0, kind: input, shape index: {}]
  %s1 = inlined_call_operand.vmem [shape: f32[1,4,1], index: 1, kind: input, shape index: {}]
  %s2 = inlined_call_operand.vmem [shape: f32[1,4,1], index: 2, kind: input, shape index: {}]
  %s3 = inlined_call_operand.vmem [shape: f32[2,4,256], index: 3, kind: output, shape index: {}]
  %s4 = sld [smem:[#allocation0]]
  $region22: #{_layer_norm_forward.1} parent=0
    _
  %s6 = ssub.s32 1, %s4
  %s7 = scalar_select 0, %s6, %s4
  // Predicated region
  $region2: #{_layer_norm_forward.1} parent=0 // pred_check
    _
  $region3: #{_layer_norm_forward.1} parent=0 // pred_check_branch
    %9 = sbr.rel (0) target = $region5
  $region4: #{_layer_norm_forward.1} parent=0 // pred_region
    _
  $region5: #{_layer_norm_forward.1} parent=0 // pred_fallthru
    _
  // Predicated region
  $region6: #{_layer_norm_forward.1} parent=0 // pred_check
    _
  $region7: #{_layer_norm_forward.1} parent=0 // pred_check_branch
    %11 = sbr.rel (0) target = $region9
  $region8: #{_layer_norm_forward.1} parent=0 // pred_region
    _
  $region9: #{_layer_norm_forward.1} parent=0 // pred_fallthru
    _
  // Predicated region
  $region10: #{_layer_norm_forward.1} parent=0 // pred_check
    _
  $region11: #{_layer_norm_forward.1} parent=0 // pred_check_branch
    %13 = sbr.rel (0) target = $region13
  $region12: #{_layer_norm_forward.1} parent=0 // pred_region
    _
  $region13: #{_layer_norm_forward.1} parent=0 // pred_fallthru
    _
  %v14 = vld [vmem:[%s0] sm:$0xff]
  %v15 = vld [vmem:[%s0 + $0x8] sm:$0xff]
  %18 = vst [vmem:[#allocation1] ss:$2 sm:$0xff] %v14
  %v19 = vld.sshfl [vmem:[#allocation1] sm:$0xff pattern:$0x75316420]
  %v20 = vld.sshfl [vmem:[#allocation1 + $0x8] sm:$0xff pattern:$0x75316420]
  %s21 = scalar_lea.vmem [#allocation1], 16
  %22 = vst [vmem:[%s21] ss:$2 sm:$0xff] %v15
  %v23 = vld.sshfl [vmem:[#allocation1 + $0x10] sm:$0xff pattern:$0x75316420]
  %v24 = vld.sshfl [vmem:[#allocation1 + $0x18] sm:$0xff pattern:$0x75316420]
  %vm29 = vcmask 1043456
  %v30 = vsel %vm29, %v19, 0.0
  %v31 = vrot.slane %v30, 4
  %v32 = vadd.f32 %v30, %v31
  %v33 = vrot.slane %v32, 2
  %v34 = vadd.f32 %v32, %v33
  %v35 = vrot.slane %v34, 1
  %v36 = vadd.f32 %v34, %v35
  %v37 = vsel %vm29, %v20, 0.0
  %v38 = vrot.slane %v37, 4
  %v39 = vadd.f32 %v37, %v38
  %v40 = vrot.slane %v39, 2
  %v41 = vadd.f32 %v39, %v40
  %v42 = vrot.slane %v41, 1
  %v43 = vadd.f32 %v41, %v42
  %v44 = vsel %vm29, %v23, 0.0
  %v45 = vrot.slane %v44, 4
  %v46 = vadd.f32 %v44, %v45
  %v47 = vrot.slane %v46, 2
  %v48 = vadd.f32 %v46, %v47
  %v49 = vrot.slane %v48, 1
  %v50 = vadd.f32 %v48, %v49
  %v51 = vsel %vm29, %v24, 0.0
  %v52 = vrot.slane %v51, 4
  %v53 = vadd.f32 %v51, %v52
  %v54 = vrot.slane %v53, 2
  %v55 = vadd.f32 %v53, %v54
  %v56 = vrot.slane %v55, 1
  %v57 = vadd.f32 %v55, %v56
  %v58 = vrcp.pop 4.0
  %v59 = vmul.f32 4.0, %v58
  %v60 = vsub.f32 1.0, %v59
  %v61 = vmul.f32 %v58, %v60
  %v62 = vadd.f32 %v58, %v61
  %vm63 = vweird.f32 %v58
  %v64 = vsel %vm63, %v58, %v62
  %v65 = vmul.f32 %v36, %v64
  %v66 = vmul.f32 %v43, %v64
  %v67 = vmul.f32 %v50, %v64
  %v68 = vmul.f32 %v57, %v64
  %v73 = vrot.slane %v66, 4
  %v74 = vrot.slane %v68, 4
  %v75 = vsel %vm29, %v65, %v73
  %v76 = vsel %vm29, %v67, %v74
  %v79 = vsub.f32 %v14, %v75
  %v80 = vsub.f32 %v15, %v76
  %v81 = vmul.f32 %v79, %v79
  %v82 = vmul.f32 %v80, %v80
  %85 = vst [vmem:[#allocation1] ss:$2 sm:$0xff] %v81
  %v86 = vld.sshfl [vmem:[#allocation1] sm:$0xff pattern:$0x75316420]
  %v87 = vld.sshfl [vmem:[#allocation1 + $0x8] sm:$0xff pattern:$0x75316420]
  %s88 = scalar_lea.vmem [#allocation1], 16
  %89 = vst [vmem:[%s88] ss:$2 sm:$0xff] %v82
  %v90 = vld.sshfl [vmem:[#allocation1 + $0x10] sm:$0xff pattern:$0x75316420]
  %v91 = vld.sshfl [vmem:[#allocation1 + $0x18] sm:$0xff pattern:$0x75316420]
  %v96 = vsel %vm29, %v86, 0.0
  %v97 = vrot.slane %v96, 4
  %v98 = vadd.f32 %v96, %v97
  %v99 = vrot.slane %v98, 2
  %v100 = vadd.f32 %v98, %v99
  %v101 = vrot.slane %v100, 1
  %v102 = vadd.f32 %v100, %v101
  %v103 = vsel %vm29, %v87, 0.0
  %v104 = vrot.slane %v103, 4
  %v105 = vadd.f32 %v103, %v104
  %v106 = vrot.slane %v105, 2
  %v107 = vadd.f32 %v105, %v106
  %v108 = vrot.slane %v107, 1
  %v109 = vadd.f32 %v107, %v108
  %v110 = vsel %vm29, %v90, 0.0
  %v111 = vrot.slane %v110, 4
  %v112 = vadd.f32 %v110, %v111
  %v113 = vrot.slane %v112, 2
  %v114 = vadd.f32 %v112, %v113
  %v115 = vrot.slane %v114, 1
  %v116 = vadd.f32 %v114, %v115
  %v117 = vsel %vm29, %v91, 0.0
  %v118 = vrot.slane %v117, 4
  %v119 = vadd.f32 %v117, %v118
  %v120 = vrot.slane %v119, 2
  %v121 = vadd.f32 %v119, %v120
  %v122 = vrot.slane %v121, 1
  %v123 = vadd.f32 %v121, %v122
  %v124 = vmul.f32 %v102, %v64
  %v125 = vmul.f32 %v109, %v64
  %v126 = vmul.f32 %v116, %v64
  %v127 = vmul.f32 %v123, %v64
  %v128 = vadd.f32 %v124, 1e-06
  %v129 = vadd.f32 %v125, 1e-06
  %v130 = vadd.f32 %v126, 1e-06
  %v131 = vadd.f32 %v127, 1e-06
  %v132 = vrsqrt.pop %v128
  %v133 = vmul.f32 %v132, %v128
  %v134 = vmul.f32 %v133, %v132
  %v135 = vmul.f32 0.5, %v134
  %v136 = vsub.f32 1.5, %v135
  %v137 = vmul.f32 %v132, %v136
  %vm138 = vweird.f32 %v128
  %vm139 = vweird.f32 %v132
  %vm140 = vmor %vm138, %vm139
  %v141 = vsel %vm140, %v132, %v137
  %v142 = vrsqrt.pop %v129
  %v143 = vmul.f32 %v142, %v129
  %v144 = vmul.f32 %v143, %v142
  %v145 = vmul.f32 0.5, %v144
  %v146 = vsub.f32 1.5, %v145
  %v147 = vmul.f32 %v142, %v146
  %vm148 = vweird.f32 %v129
  %vm149 = vweird.f32 %v142
  %vm150 = vmor %vm148, %vm149
  %v151 = vsel %vm150, %v142, %v147
  %v152 = vrsqrt.pop %v130
  %v153 = vmul.f32 %v152, %v130
  %v154 = vmul.f32 %v153, %v152
  %v155 = vmul.f32 0.5, %v154
  %v156 = vsub.f32 1.5, %v155
  %v157 = vmul.f32 %v152, %v156
  %vm158 = vweird.f32 %v130
  %vm159 = vweird.f32 %v152
  %vm160 = vmor %vm158, %vm159
  %v161 = vsel %vm160, %v152, %v157
  %v162 = vrsqrt.pop %v131
  %v163 = vmul.f32 %v162, %v131
  %v164 = vmul.f32 %v163, %v162
  %v165 = vmul.f32 0.5, %v164
  %v166 = vsub.f32 1.5, %v165
  %v167 = vmul.f32 %v162, %v166
  %vm168 = vweird.f32 %v131
  %vm169 = vweird.f32 %v162
  %vm170 = vmor %vm168, %vm169
  %v171 = vsel %vm170, %v162, %v167
  %v172 = vld [vmem:[%s1] sm:$0xf]
  %174 = vset.pattern.permute.xlu0 0
  %175 = vperm.xlu0 %174, %v172
  %v176 = vpop.permute.xlu0 %175
  %v178 = vmul.f32 %v141, %v176
  %v179 = vmul.f32 %v151, %v176
  %v180 = vmul.f32 %v161, %v176
  %v181 = vmul.f32 %v171, %v176
  %v186 = vrot.slane %v179, 4
  %v187 = vrot.slane %v181, 4
  %v188 = vsel %vm29, %v178, %v186
  %v189 = vsel %vm29, %v180, %v187
  %v192 = vmul.f32 %v79, %v188
  %v193 = vmul.f32 %v80, %v189
  %v194 = vld [vmem:[%s2] sm:$0xf]
  %196 = vset.pattern.permute.xlu0 0
  %197 = vperm.xlu0 %196, %v194
  %v198 = vpop.permute.xlu0 %197
  %v200 = vunpack.c.l.s4 839922192
  %v201 = vunpack.c.0.s8 %v200
  %v202 = vperm.slane %v198, %v201
  %v204 = vadd.f32 %v192, %v202
  %v205 = vadd.f32 %v193, %v202
  %206 = vst [vmem:[%s3] sm:$0xff] %v204
  %207 = vst [vmem:[%s3 + $0x8] sm:$0xff] %v205
  // Predicated region
  $region14: #{_layer_norm_forward.1} parent=0 // pred_check
    _
  $region15: #{_layer_norm_forward.1} parent=0 // pred_check_branch
    %209 = sbr.rel (0) target = $region17
  $region16: #{_layer_norm_forward.1} parent=0 // pred_region
    _
  $region17: #{_layer_norm_forward.1} parent=0 // pred_fallthru
    _
  // Predicated region
  $region18: #{_layer_norm_forward.1} parent=0 // pred_check
    _
  $region19: #{_layer_norm_forward.1} parent=0 // pred_check_branch
    %211 = sbr.rel (0) target = $region21
  $region20: #{_layer_norm_forward.1} parent=0 // pred_region
    _
  $region21: #{_layer_norm_forward.1} parent=0 // pred_fallthru
    _

</llo_original>
